<compile_context>
chip_gen: v5e
topology: v5e:2x2
jax: 0.10.0
libtpu: 0.0.40
codegen_flags: <defaults>
</compile_context>

<pallas_src>
import functools

import jax
import jax.numpy as jnp
from jax.experimental import pallas as pl
from jax.experimental.pallas import tpu as pltpu


def _round_up(x: int, m: int) -> int:
    return ((x + m - 1) // m) * m


def _pick_tile(dim: int, max_tile: int, align: int) -> int:
    """Largest useful tile <= max_tile, multiple of `align`, minimizing padding."""
    padded = _round_up(dim, align)
    if padded <= max_tile:
        return padded  # one tile covers the whole (aligned) dim -> minimal padding
    best_t, best_waste = align, None
    t = align
    while t <= max_tile:
        waste = _round_up(dim, t) - dim
        if best_waste is None or waste < best_waste or (waste == best_waste and t > best_t):
            best_t, best_waste = t, waste
        t += align
    return best_t


def _output_kernel(x_ref, w_ref, o_ref, *, act_func: str):
    # x_ref: (tm, tk)   w_ref: (tk, tn)   o_ref: (tm, tn) f32, resident across k.
    k = pl.program_id(2)

    # Canonical MXU matmul, f32 accumulation, no operand transpose needed.
    partial = jnp.dot(x_ref[...], w_ref[...], preferred_element_type=jnp.float32)

    @pl.when(k == 0)
    def _():
        o_ref[...] = partial            # first K step: plain write (no zero-init + add)

    @pl.when(k > 0)
    def _():
        o_ref[...] += partial

    @pl.when(k == pl.num_programs(2) - 1)
    def _():
        acc = o_ref[...]
        if act_func == "sigmoid":
            o_ref[...] = jax.nn.sigmoid(acc)
        elif act_func == "tanh":
            o_ref[...] = jnp.tanh(acc)
        # "no_act": o_ref already holds the linear result.


def output_forward(x, weight, act_func: str = "sigmoid"):
    """Forward pass of `Output`.

    x:      (batch, input_size)          float32
    weight: (output_size, input_size)    float32 (native PyTorch nn.Linear layout)
    returns (batch, output_size)         float32
    """
    if act_func not in ("sigmoid", "tanh", "no_act"):
        raise ValueError(f"unsupported act_func: {act_func}")

    x = x.astype(jnp.float32)
    weight = weight.astype(jnp.float32)

    batch, input_size = x.shape
    output_size, w_in = weight.shape
    assert w_in == input_size

    # One-time transpose of the parameter to (I, O): amortized over all M tiles
    # and all calls; removes per-grid-step transposes inside the kernel.
    w_t = weight.T

    # (8,128)-aligned, lane-dense tiles chosen to minimize padding waste.
    # Double-buffered footprint 2*(tm*tk + tk*tn + tm*tn)*4 <= ~16 MiB at the
    # caps below, which fits the 32 MiB scoped-VMEM default on v5e/v6e/v7x.
    tm = _pick_tile(batch, 512, 8)
    tn = _pick_tile(output_size, 1024, 128)
    tk = _pick_tile(input_size, 1024, 128)

    b_p = _round_up(batch, tm)
    o_p = _round_up(output_size, tn)
    i_p = _round_up(input_size, tk)

    # Pad only what is strictly needed (K zero-padding keeps the reduction exact;
    # padded M rows / N cols are sliced off after the call).
    if (b_p, i_p) != (batch, input_size):
        x = jnp.pad(x, ((0, b_p - batch), (0, i_p - input_size)))
    if (i_p, o_p) != (input_size, output_size):
        w_t = jnp.pad(w_t, ((0, i_p - input_size), (0, o_p - output_size)))

    grid = (b_p // tm, o_p // tn, i_p // tk)

    kernel = functools.partial(_output_kernel, act_func=act_func)

    # Advisory cost estimate: account for re-streaming (x read once per N tile,
    # W read once per M tile) plus one output write.
    flops = 2 * b_p * i_p * o_p
    transcendentals = b_p * o_p if act_func in ("sigmoid", "tanh") else 0
    bytes_accessed = 4 * (
        b_p * i_p * (o_p // tn) + i_p * o_p * (b_p // tm) + b_p * o_p
    )

    tile_bytes = 4 * 2 * (tm * tk + tk * tn + tm * tn)
    vmem_limit = min(48 * 1024 * 1024, max(32 * 1024 * 1024, tile_bytes + 8 * 1024 * 1024))

    out = pl.pallas_call(
        kernel,
        out_shape=jax.ShapeDtypeStruct((b_p, o_p), jnp.float32),
        grid_spec=pltpu.PrefetchScalarGridSpec(
            num_scalar_prefetch=0,
            grid=grid,
            in_specs=[
                pl.BlockSpec((tm, tk), lambda i, j, k: (i, k)),   # x tile
                pl.BlockSpec((tk, tn), lambda i, j, k: (k, j)),   # W^T tile (I, O)
            ],
            out_specs=pl.BlockSpec((tm, tn), lambda i, j, k: (i, j)),
        ),
        compiler_params=pltpu.CompilerParams(
            dimension_semantics=("parallel", "parallel", "arbitrary"),
            vmem_limit_bytes=vmem_limit,
        ),
        cost_estimate=pl.CostEstimate(
            flops=flops,
            transcendentals=transcendentals,
            bytes_accessed=bytes_accessed,
        ),
    )(x, w_t)

    if (b_p, o_p) != (batch, output_size):
        out = out[:batch, :output_size]
    return out


if __name__ == "__main__":
    # Small shapes consistent with the module's forward: d has last dim = input_size.
    batch = 8
    input_size = 32
    output_size = 16

    key = jax.random.PRNGKey(0)
    kx, kw = jax.random.split(key)

    x = jax.random.normal(kx, (batch, input_size), dtype=jnp.float32)
    # Deterministic parameter init (synthetic; matches nn.Linear weight shape (O, I)).
    bound = 1.0 / (input_size ** 0.5)
    weight = jax.random.uniform(
        kw, (output_size, input_size), dtype=jnp.float32, minval=-bound, maxval=bound
    )

    ok = True
    for act in ("sigmoid", "tanh", "no_act"):
        y = output_forward(x, weight, act_func=act)
        y = jax.block_until_ready(y)

        # Reference in plain JAX (same semantics as PyTorch Linear(bias=False) + act).
        y_lin = x @ weight.T
        if act == "sigmoid":
            y_ref = jax.nn.sigmoid(y_lin)
        elif act == "tanh":
            y_ref = jnp.tanh(y_lin)
        else:
            y_ref = y_lin

        ok = ok and (y.shape == (batch, output_size))
        ok = ok and bool(jnp.allclose(y, y_ref, atol=1e-5, rtol=1e-5))

    assert ok
    print("KERNEL_OK")
</pallas_src>

<mosaic_0001>
module attributes {stable_mosaic.version = 11 : i64} {
  func.func @_output_kernel(%arg0: i32, %arg1: i32, %arg2: i32, %arg3: memref<8x128xf32, #tpu.memory_space<vmem>>, %arg4: memref<128x128xf32, #tpu.memory_space<vmem>>, %arg5: memref<8x128xf32, #tpu.memory_space<vmem>>) attributes {dimension_semantics = [#tpu.dimension_semantics<parallel>, #tpu.dimension_semantics<parallel>, #tpu.dimension_semantics<arbitrary>], iteration_bounds = array<i64: 1, 1, 1>, scalar_prefetch = 0 : i64, scratch_operands = 0 : i64, tpu.core_type = #tpu.core_type<tc>, window_params = [{transform_indices = @transform_0, window_bounds = array<i64: 8, 128>}, {transform_indices = @transform_1, window_bounds = array<i64: 128, 128>}, {transform_indices = @transform_2, window_bounds = array<i64: 8, 128>}]} {
    %c0 = arith.constant 0 : index
    %c0_0 = arith.constant 0 : index
    %0 = vector.load %arg3[%c0, %c0_0] : memref<8x128xf32, #tpu.memory_space<vmem>>, vector<8x128xf32>
    %c0_1 = arith.constant 0 : index
    %c0_2 = arith.constant 0 : index
    %1 = vector.load %arg4[%c0_1, %c0_2] : memref<128x128xf32, #tpu.memory_space<vmem>>, vector<128x128xf32>
    %cst = arith.constant dense<0.000000e+00> : vector<8x128xf32>
    %2 = tpu.matmul %0, %1, %cst {dimension_numbers = #tpu.dot_dimension_numbers<[1], [0], [0], [1], [0, 0, 1, 1], [], []>} : vector<8x128xf32>, vector<128x128xf32>, vector<8x128xf32> -> vector<8x128xf32>
    %c0_i32 = arith.constant 0 : i32
    %3 = arith.cmpi eq, %arg2, %c0_i32 : i32
    %4 = arith.extui %3 : i1 to i32
    %c0_i32_3 = arith.constant 0 : i32
    %5 = arith.cmpi ne, %4, %c0_i32_3 : i32
    scf.if %5 {
      %c0_8 = arith.constant 0 : index
      %c0_9 = arith.constant 0 : index
      %12 = vector.load %arg5[%c0_8, %c0_9] : memref<8x128xf32, #tpu.memory_space<vmem>>, vector<8x128xf32>
      tpu.vector_store %arg5[%c0_8, %c0_9], %2 {strides = array<i32>} : memref<8x128xf32, #tpu.memory_space<vmem>>, vector<8x128xf32>,
    } else {
    }
    %c0_i32_4 = arith.constant 0 : i32
    %6 = arith.cmpi sgt, %arg2, %c0_i32_4 : i32
    %7 = arith.extui %6 : i1 to i32
    %c0_i32_5 = arith.constant 0 : i32
    %8 = arith.cmpi ne, %7, %c0_i32_5 : i32
    scf.if %8 {
      %c0_8 = arith.constant 0 : index
      %c0_9 = arith.constant 0 : index
      %12 = vector.load %arg5[%c0_8, %c0_9] : memref<8x128xf32, #tpu.memory_space<vmem>>, vector<8x128xf32>
      %13 = arith.addf %12, %2 : vector<8x128xf32>
      %c0_10 = arith.constant 0 : index
      %c0_11 = arith.constant 0 : index
      %14 = vector.load %arg5[%c0_10, %c0_11] : memref<8x128xf32, #tpu.memory_space<vmem>>, vector<8x128xf32>
      tpu.vector_store %arg5[%c0_10, %c0_11], %13 {strides = array<i32>} : memref<8x128xf32, #tpu.memory_space<vmem>>, vector<8x128xf32>,
    } else {
    }
    %c0_i32_6 = arith.constant 0 : i32
    %9 = arith.cmpi eq, %arg2, %c0_i32_6 : i32
    %10 = arith.extui %9 : i1 to i32
    %c0_i32_7 = arith.constant 0 : i32
    %11 = arith.cmpi ne, %10, %c0_i32_7 : i32
    scf.if %11 {
      %c0_8 = arith.constant 0 : index
      %c0_9 = arith.constant 0 : index
      %12 = vector.load %arg5[%c0_8, %c0_9] : memref<8x128xf32, #tpu.memory_space<vmem>>, vector<8x128xf32>
      %13 = arith.negf %12 : vector<8x128xf32>
      %14 = math.exp %13 : vector<8x128xf32>
      %cst_10 = arith.constant 1.000000e+00 : f32
      %15 = vector.broadcast %cst_10 : f32 to vector<8x128xf32>
      %16 = arith.addf %15, %14 : vector<8x128xf32>
      %17 = arith.divf %15, %16 : vector<8x128xf32>
      %c0_11 = arith.constant 0 : index
      %c0_12 = arith.constant 0 : index
      %18 = vector.load %arg5[%c0_11, %c0_12] : memref<8x128xf32, #tpu.memory_space<vmem>>, vector<8x128xf32>
      tpu.vector_store %arg5[%c0_11, %c0_12], %17 {strides = array<i32>} : memref<8x128xf32, #tpu.memory_space<vmem>>, vector<8x128xf32>,
    } else {
    }
    return
  }
  func.func @transform_0(%arg0: i32, %arg1: i32, %arg2: i32) -> (i32, i32) {
    %c0_i32 = arith.constant 0 : i32
    return %arg0, %arg2 : i32, i32
  }
  func.func @transform_1(%arg0: i32, %arg1: i32, %arg2: i32) -> (i32, i32) {
    %c0_i32 = arith.constant 0 : i32
    return %arg2, %arg1 : i32, i32
  }
  func.func @transform_2(%arg0: i32, %arg1: i32, %arg2: i32) -> (i32, i32) {
    %c0_i32 = arith.constant 0 : i32
    return %arg0, %arg1 : i32, i32
  }
}

</mosaic_0001>

<llo_original>
// kernel: tpu_custom_call.1
$region0: #{tpu_custom_call.1}
  #allocation0 [shape = 'u32[]', space=smem, size = 0x4, offset = 0x4, fixed_abs, tag = 'smem constant byte address 0x4 - core index']
  #allocation1 [shape = 'u32[72,128]{1,0:T(1,128)}', space=vmem, size = 0x9000, scoped, tag = 'internal scratch']
  %s0 = inlined_call_operand.hbm [shape: f32[8,128], index: 0, kind: input, shape index: {}]
  %s1 = inlined_call_operand.hbm [shape: f32[128,128], index: 1, kind: input, shape index: {}]
  %s2 = inlined_call_operand.hbm [shape: f32[8,128], index: 2, kind: output, shape index: {}]
  %s3 = sld [smem:[#allocation0]]
  $region38: #{tpu_custom_call.1} parent=0
    _
  %s5 = ssub.s32 1, %s3
  %s6 = scalar_select 0, %s5, %s3
  $region1: #{tpu_custom_call.1} parent=0
    #allocation2 [shape = 'u8[4096]{0}', space=vmem, size = 0x1000, scoped, tag = 'input window, operand 0, single buffered']
    #allocation3 [shape = 's32[1]{0}', space=sflag, size = 0x4, scoped, tag = 'scoped memory for tpu_custom_call.1']
    #allocation4 [shape = 's32[1]{0}', space=sflag, size = 0x4, scoped, tag = 'scoped memory for tpu_custom_call.1']
    #allocation5 [shape = 'u8[65536]{0}', space=vmem, size = 0x10000, scoped, tag = 'input window, operand 1, single buffered']
    #allocation6 [shape = 's32[1]{0}', space=sflag, size = 0x4, scoped, tag = 'scoped memory for tpu_custom_call.1']
    #allocation7 [shape = 'u8[4096]{0}', space=vmem, size = 0x1000, scoped, tag = 'output window, operand 0, single buffered']
    %7 = vsyncpa [#allocation3], 0
    %8 = vsyncpa [#allocation6], 0
    %9 = vsyncpa [#allocation4], 0
    // Predicated region
    $region2: #{tpu_custom_call.1} parent=1 // pred_check
      _
    $region3: #{tpu_custom_call.1} parent=1 // pred_check_branch
      %11 = sbr.rel (0) target = $region5
    $region4: #{tpu_custom_call.1} parent=1 // pred_region
      %13 = vsyncadd [#allocation3], 0
      %s15 = sshll.u32 %s0, 4
      %s16 = int_to_ptr.hbm [resolvable:$true] %s15
      %s17 = sshll.u32 [#allocation2], 4
      %s18 = int_to_ptr.vmem [resolvable:$true] %s17
      %20 = dma.hbm_to_vmem [thread:$0]  %s16, 128, %s18, [#allocation3]
    $region5: #{tpu_custom_call.1} parent=1 // pred_fallthru
      _
    // Predicated region
    $region6: #{tpu_custom_call.1} parent=1 // pred_check
      _
    $region7: #{tpu_custom_call.1} parent=1 // pred_check_branch
      %22 = sbr.rel (0) target = $region9
    $region8: #{tpu_custom_call.1} parent=1 // pred_region
      %24 = vsyncadd [#allocation6], 0
      %s25 = sshll.u32 %s1, 4
      %s26 = int_to_ptr.hbm [resolvable:$true] %s25
      %s27 = sshll.u32 [#allocation5], 4
      %s28 = int_to_ptr.vmem [resolvable:$true] %s27
      %33 = dma.hbm_to_vmem [thread:$0]  %s26, 2048, %s28, [#allocation6], 128, 128, 8
    $region9: #{tpu_custom_call.1} parent=1 // pred_fallthru
      _
    // Predicated region
    $region10: #{tpu_custom_call.1} parent=1 // pred_check
      _
    $region11: #{tpu_custom_call.1} parent=1 // pred_check_branch
      %35 = sbr.rel (0) target = $region13
    $region12: #{tpu_custom_call.1} parent=1 // pred_region
      %37 = dma.done [#allocation3], 128
    $region13: #{tpu_custom_call.1} parent=1 // pred_fallthru
      _
    // Predicated region
    $region14: #{tpu_custom_call.1} parent=1 // pred_check
      _
    $region15: #{tpu_custom_call.1} parent=1 // pred_check_branch
      %39 = sbr.rel (0) target = $region17
    $region16: #{tpu_custom_call.1} parent=1 // pred_region
      %41 = dma.done [#allocation6], 2048
    $region17: #{tpu_custom_call.1} parent=1 // pred_fallthru
      _
    %v42 = vld [vmem:[#allocation2] sm:$0xff]
    %v43 = vld [vmem:[#allocation5] sm:$0xff]
    %v44 = vld [vmem:[#allocation5 + $0x8] sm:$0xff]
    %v45 = vld [vmem:[#allocation5 + $0x10] sm:$0xff]
    %v46 = vld [vmem:[#allocation5 + $0x18] sm:$0xff]
    %v47 = vld [vmem:[#allocation5 + $0x20] sm:$0xff]
    %v48 = vld [vmem:[#allocation5 + $0x28] sm:$0xff]
    %v49 = vld [vmem:[#allocation5 + $0x30] sm:$0xff]
    %v50 = vld [vmem:[#allocation5 + $0x38] sm:$0xff]
    %v51 = vld [vmem:[#allocation5 + $0x40] sm:$0xff]
    %v52 = vld [vmem:[#allocation5 + $0x48] sm:$0xff]
    %v53 = vld [vmem:[#allocation5 + $0x50] sm:$0xff]
    %v54 = vld [vmem:[#allocation5 + $0x58] sm:$0xff]
    %v55 = vld [vmem:[#allocation5 + $0x60] sm:$0xff]
    %v56 = vld [vmem:[#allocation5 + $0x68] sm:$0xff]
    %v57 = vld [vmem:[#allocation5 + $0x70] sm:$0xff]
    %v58 = vld [vmem:[#allocation5 + $0x78] sm:$0xff]
    %59 = vmatpush.msra.mxu0 %v58
    %60 = vmatpush.msra.mxu0 %v57
    %61 = vmatpush.msra.mxu0 %v56
    %62 = vmatpush.msra.mxu0 %v55
    %63 = vmatpush.msra.mxu0 %v54
    %64 = vmatpush.msra.mxu0 %v53
    %65 = vmatpush.msra.mxu0 %v52
    %66 = vmatpush.msra.mxu0 %v51
    %67 = vmatpush.msra.mxu0 %v50
    %68 = vmatpush.msra.mxu0 %v49
    %69 = vmatpush.msra.mxu0 %v48
    %70 = vmatpush.msra.mxu0 %v47
    %71 = vmatpush.msra.mxu0 %v46
    %72 = vmatpush.msra.mxu0 %v45
    %73 = vmatpush.msra.mxu0 %v44
    %74 = vmatpush.msra.mxu0 %v43
    %75 = vmatmul.f32.gmra.mxu0 %v42
    %v76 = vpop.f32.mrf.mxu0
    %v77 = vadd.f32 0.0, %v76
    %78 = vdwg.mxu0
    %p79 = scmp.eq.s32.totalorder 0, 0
    // Predicated region
    $region18: #{tpu_custom_call.1} parent=1 // pred_check
      %p80 = pneg %p79
    $region19: #{tpu_custom_call.1} parent=1 // pred_check_branch
      %82 = sbr.rel (%p80) target = $region21
    $region20: #{tpu_custom_call.1} parent=1 // pred_region
      %83 = vst [vmem:[#allocation7] sm:$0xff] %v77
    $region21: #{tpu_custom_call.1} parent=1 // pred_fallthru
      _
    %p84 = scmp.gt.s32.totalorder 0, 0
    // Predicated region
    $region22: #{tpu_custom_call.1} parent=1 // pred_check
      %p85 = pneg %p84
    $region23: #{tpu_custom_call.1} parent=1 // pred_check_branch
      %87 = sbr.rel (%p85) target = $region25
    $region24: #{tpu_custom_call.1} parent=1 // pred_region
      %v88 = vld [vmem:[#allocation7] sm:$0xff]
      %v89 = vadd.f32 %v88, %v77
      %90 = vst [vmem:[#allocation7] sm:$0xff] %v89
    $region25: #{tpu_custom_call.1} parent=1 // pred_fallthru
      _
    // Predicated region
    $region26: #{tpu_custom_call.1} parent=1 // pred_check
      %p91 = pneg %p79
    $region27: #{tpu_custom_call.1} parent=1 // pred_check_branch
      %93 = sbr.rel (%p91) target = $region29
    $region28: #{tpu_custom_call.1} parent=1 // pred_region
      %v94 = vld [vmem:[#allocation7] sm:$0xff]
      %v95 = vxor.u32 %v94, 2147483648
      %v96 = vmul.f32 %v95, 1.442695
      %v97 = vpow.pop %v96
      %v98 = vadd.f32 %v97, 1.0
      %v99 = vrcp.pop %v98
      %v100 = vmul.f32 %v98, %v99
      %v101 = vsub.f32 1.0, %v100
      %v102 = vmul.f32 %v99, %v101
      %v103 = vadd.f32 %v99, %v102
      %vm104 = vweird.f32 %v98
      %vm105 = vweird.f32 %v99
      %vm106 = vmor %vm104, %vm105
      %v107 = vsel %vm106, %v99, %v103
      %v108 = vand.u32 2147483647, %v98
      %vm109 = vcmp.eq.f32.partialorder %v108, 8.507059e+37
      %v110 = vand.u32 %v98, 2147483648
      %v111 = vor.u32 1.1754944e-38, %v110
      %v112 = vsel %vm109, %v111, %v107
      %v113 = vmul.f32 1.0, %v112
      %114 = vst [vmem:[#allocation7] sm:$0xff] %v113
    $region29: #{tpu_custom_call.1} parent=1 // pred_fallthru
      _
    // Predicated region
    $region30: #{tpu_custom_call.1} parent=1 // pred_check
      _
    $region31: #{tpu_custom_call.1} parent=1 // pred_check_branch
      %116 = sbr.rel (0) target = $region33
    $region32: #{tpu_custom_call.1} parent=1 // pred_region
      %118 = vsyncadd [#allocation4], 0
      %s120 = sshll.u32 [#allocation7], 4
      %s121 = int_to_ptr.vmem [resolvable:$true] %s120
      %s122 = sshll.u32 %s2, 4
      %s123 = int_to_ptr.hbm [resolvable:$true] %s122
      %125 = dma.vmem_to_hbm [thread:$0]  %s121, 128, %s123, [#allocation4]
    $region33: #{tpu_custom_call.1} parent=1 // pred_fallthru
      _
    // Predicated region
    $region34: #{tpu_custom_call.1} parent=1 // pred_check
      _
    $region35: #{tpu_custom_call.1} parent=1 // pred_check_branch
      %127 = sbr.rel (0) target = $region37
    $region36: #{tpu_custom_call.1} parent=1 // pred_region
      %129 = dma.done [#allocation4], 128
    $region37: #{tpu_custom_call.1} parent=1 // pred_fallthru
      _
    %130 = vsyncpa [#allocation3], 1
    %131 = vsyncpa [#allocation6], 1
    %132 = vsyncpa [#allocation4], 1

</llo_original>
